<compile_context>
chip_gen: v5e
topology: v5e:2x2
jax: 0.10.0
libtpu: 0.0.40
codegen_flags: <defaults>
</compile_context>

<pallas_src>
import functools

import jax
import jax.numpy as jnp
from jax.experimental import pallas as pl
from jax.experimental.pallas import tpu as pltpu


# ---------------------------------------------------------------------------
# Kernel: one batch tile of Linear -> ReLU -> Linear -> ReLU -> Linear.
# Weights arrive pre-transposed to (in, out), pre-cast (bf16 by default) and
# (when lane-packing is active) block-diagonal, so the packed (rows, 128)
# input slab maps directly onto MXU matmuls with f32 accumulation.
# ---------------------------------------------------------------------------
def mlp_relu_ae_kernel(x_ref, w1_ref, b1_ref, w2_ref, b2_ref, w3_ref, b3_ref, o_ref):
    x = x_ref[...].astype(w1_ref.dtype)

    # Layer 1: (tr, Pd) @ (Pd, pK) -> (tr, pK)
    h1 = jnp.dot(x, w1_ref[...], preferred_element_type=jnp.float32) + b1_ref[...]
    h1 = jnp.maximum(h1, 0.0).astype(w2_ref.dtype)

    # Layer 2: (tr, pK) @ (pK, pH) -> (tr, pH)
    h2 = jnp.dot(h1, w2_ref[...], preferred_element_type=jnp.float32) + b2_ref[...]
    h2 = jnp.maximum(h2, 0.0).astype(w3_ref.dtype)

    # Layer 3 (no activation): (tr, pH) @ (pH, Pd) -> (tr, Pd)
    out = jnp.dot(h2, w3_ref[...], preferred_element_type=jnp.float32) + b3_ref[...]
    o_ref[...] = out.astype(o_ref.dtype)


# ---------------------------------------------------------------------------
# One-time parameter preparation (hoisted out of the per-call path):
#  * PyTorch (out, in) weights -> (in, out), cast to bf16.
#  * If dim < 128 and divides 128, expand to block-diagonal kron(I_pack, W^T)
#    so the kernel can run on lane-dense (rows, pack*dim) slabs.
#  * Biases tiled `pack` times, kept f32 as (1, pack*out) rows.
# ---------------------------------------------------------------------------
def prepare_params(params, weights_dtype=jnp.bfloat16, pack=None):
    w1 = jnp.asarray(params["w1"], jnp.float32)   # (K, dim)
    w2 = jnp.asarray(params["w2"], jnp.float32)   # (H, K)
    w3 = jnp.asarray(params["w3"], jnp.float32)   # (dim, H)
    b1 = jnp.asarray(params["b1"], jnp.float32)   # (K,)
    b2 = jnp.asarray(params["b2"], jnp.float32)   # (H,)
    b3 = jnp.asarray(params["b3"], jnp.float32)   # (dim,)

    K, dim = w1.shape
    H = w2.shape[0]
    assert w2.shape == (H, K) and w3.shape == (dim, H)
    assert b1.shape == (K,) and b2.shape == (H,) and b3.shape == (dim,)

    if pack is None:
        pack = 128 // dim if (0 < dim < 128 and 128 % dim == 0) else 1

    def blockdiag(w_t):  # w_t: (in, out) -> (pack*in, pack*out)
        if pack == 1:
            return w_t
        return jnp.kron(jnp.eye(pack, dtype=w_t.dtype), w_t)

    def tile_bias(b):
        return jnp.tile(b, pack)[None, :]

    return {
        "w1": blockdiag(w1.T).astype(weights_dtype),  # (pack*dim, pack*K)
        "b1": tile_bias(b1),                          # (1, pack*K)
        "w2": blockdiag(w2.T).astype(weights_dtype),  # (pack*K, pack*H)
        "b2": tile_bias(b2),                          # (1, pack*H)
        "w3": blockdiag(w3.T).astype(weights_dtype),  # (pack*H, pack*dim)
        "b3": tile_bias(b3),                          # (1, pack*dim)
    }


# ---------------------------------------------------------------------------
# Hardware queries (best-effort, with conservative fallbacks).
# ---------------------------------------------------------------------------
def _vmem_capacity_bytes():
    try:
        return int(pltpu.get_tpu_info().vmem_capacity_bytes)
    except Exception:
        pass
    try:
        kind = jax.devices()[0].device_kind.lower()
        if "v7" in kind:
            return 64 * 1024 * 1024     # v7x: 64 MiB per TensorCore
        return 128 * 1024 * 1024        # v5e / v6e: 128 MiB
    except Exception:
        return 64 * 1024 * 1024         # conservative default


def _num_tensorcores_per_device():
    try:
        kind = jax.devices()[0].device_kind.lower()
        if "v7" in kind:
            return 2                    # v7x megacore: 2 TCs per device
    except Exception:
        pass
    return 1


def _pick_tile_rows(rows, row_bytes, tile_budget_bytes, cores):
    """Largest multiple-of-8 divisor of `rows` that fits the VMEM tile budget;
    on multi-core chips also capped at rows//cores so the grid has >= cores steps."""
    if rows % 8 != 0:
        return rows                     # full-array block (exempt from (8,128) rule)
    cap = min(rows, max(8, tile_budget_bytes // max(row_bytes, 1)))
    if cores > 1:
        cap = min(cap, max(8, rows // cores))
    cap -= cap % 8
    cap = max(cap, 8)
    t = cap
    while t >= 8:
        if rows % t == 0:
            return t
        t -= 8
    return rows


# ---------------------------------------------------------------------------
# Forward wrapper.
# ---------------------------------------------------------------------------
@functools.partial(jax.jit, static_argnames=("tile_rows",))
def mlp_relu_ae_forward(x, prepared, *, tile_rows=None):
    """Pallas forward pass of mlpRelu_AE.

    x:        (B, dim) float32
    prepared: output of prepare_params() — (in, out) bf16 weights (optionally
              block-diagonal lane-packed), f32 (1, out) biases.
    """
    B, dim = x.shape
    w1, b1 = prepared["w1"], prepared["b1"]
    w2, b2 = prepared["w2"], prepared["b2"]
    w3, b3 = prepared["w3"], prepared["b3"]

    Pd, pK = w1.shape
    pH = w2.shape[1]
    assert Pd % dim == 0, "prepared weights inconsistent with x feature dim"
    pack = Pd // dim
    assert w2.shape == (pK, pH) and w3.shape == (pH, Pd)
    assert b1.shape == (1, pK) and b2.shape == (1, pH) and b3.shape == (1, Pd)
    assert B % pack == 0, (
        "batch not divisible by lane-pack factor; re-run prepare_params(pack=1) or pad B"
    )

    rows = B // pack
    # Contiguous row-major reshape -> free; presents a lane-dense (rows, Pd) slab.
    x_p = x.reshape(rows, Pd)

    w_itemsize = jnp.dtype(w1.dtype).itemsize
    io_itemsize = jnp.dtype(x.dtype).itemsize
    w_bytes = (Pd * pK + pK * pH + pH * Pd) * w_itemsize
    bias_bytes = (pK + pH + Pd) * 4

    vmem_budget = (3 * _vmem_capacity_bytes()) // 4    # leave ~25% headroom (v7x esp.)
    cores = _num_tensorcores_per_device()

    if tile_rows is None:
        row_bytes = (
            4 * Pd * io_itemsize                # double-buffered x + out tiles
            + (pK + pH + Pd) * 4                # f32 intermediates
            + (Pd + pK + pH) * w_itemsize       # narrow copies feeding the MXU
        )
        tile_budget = max(0, vmem_budget - w_bytes - bias_bytes) // 2
        tile_rows = _pick_tile_rows(rows, row_bytes, tile_budget, cores)
    assert rows % tile_rows == 0, "rows must be divisible by tile_rows (pad batch if ragged)"
    assert tile_rows % 8 == 0 or tile_rows == rows

    # Full-weight residency check against the VMEM budget.
    x_tile_bytes = tile_rows * Pd * io_itemsize
    act_bytes = tile_rows * ((pK + pH + Pd) * 4 + (Pd + pK + pH) * w_itemsize)
    vmem_need = 4 * x_tile_bytes + w_bytes + bias_bytes + act_bytes
    assert vmem_need <= vmem_budget, (
        f"weights+tiles ({vmem_need} B) exceed VMEM budget ({vmem_budget} B); "
        "reduce tile_rows or add K/N weight tiling"
    )
    vmem_limit = int(min(vmem_budget, max(2 * vmem_need, 16 * 1024 * 1024)))

    # Advisory cost estimate (helps XLA overlap surrounding ops).
    flops = 2 * rows * (Pd * pK + pK * pH + pH * Pd)
    bytes_accessed = 2 * rows * Pd * io_itemsize + w_bytes + bias_bytes

    # Grid-invariant operands: single-buffer (never re-DMA'd across steps).
    const_buf = pl.Buffered(buffer_count=1)

    grid = (rows // tile_rows,)
    out_p = pl.pallas_call(
        mlp_relu_ae_kernel,
        out_shape=jax.ShapeDtypeStruct((rows, Pd), x.dtype),
        grid_spec=pltpu.PrefetchScalarGridSpec(
            num_scalar_prefetch=0,
            grid=grid,
            in_specs=[
                # x tile (double-buffered; bump to pl.Buffered(3) only if a
                # profile shows exposed x DMA at large tile_rows).
                pl.BlockSpec((tile_rows, Pd), lambda i: (i, 0)),
                pl.BlockSpec((Pd, pK), lambda i: (0, 0), pipeline_mode=const_buf),  # W1
                pl.BlockSpec((1, pK), lambda i: (0, 0), pipeline_mode=const_buf),   # b1
                pl.BlockSpec((pK, pH), lambda i: (0, 0), pipeline_mode=const_buf),  # W2
                pl.BlockSpec((1, pH), lambda i: (0, 0), pipeline_mode=const_buf),   # b2
                pl.BlockSpec((pH, Pd), lambda i: (0, 0), pipeline_mode=const_buf),  # W3
                pl.BlockSpec((1, Pd), lambda i: (0, 0), pipeline_mode=const_buf),   # b3
            ],
            out_specs=pl.BlockSpec((tile_rows, Pd), lambda i: (i, 0)),
        ),
        compiler_params=pltpu.CompilerParams(
            dimension_semantics=("parallel",),   # batch tiles shard across TCs (v7x)
            vmem_limit_bytes=vmem_limit,
        ),
        cost_estimate=pl.CostEstimate(
            flops=flops, transcendentals=0, bytes_accessed=bytes_accessed
        ),
    )(x_p, w1, b1, w2, b2, w3, b3)

    return out_p.reshape(B, dim)


# ---------------------------------------------------------------------------
# Reference / init helpers.
# ---------------------------------------------------------------------------
def init_params(key, dim, K, H=256, dtype=jnp.float32):
    """Deterministic init mirroring nn.Linear's U(-1/sqrt(fan_in), 1/sqrt(fan_in)),
    stored in PyTorch (out_features, in_features) convention."""
    ks = jax.random.split(key, 6)

    def lin(kw, kb, out_f, in_f):
        bound = 1.0 / jnp.sqrt(jnp.array(in_f, dtype))
        w = jax.random.uniform(kw, (out_f, in_f), dtype, -bound, bound)
        b = jax.random.uniform(kb, (out_f,), dtype, -bound, bound)
        return w, b

    w1, b1 = lin(ks[0], ks[1], K, dim)
    w2, b2 = lin(ks[2], ks[3], H, K)
    w3, b3 = lin(ks[4], ks[5], dim, H)
    return {"w1": w1, "b1": b1, "w2": w2, "b2": b2, "w3": w3, "b3": b3}


def reference_forward(x, p):
    h1 = jnp.maximum(x @ p["w1"].T + p["b1"], 0.0)
    h2 = jnp.maximum(h1 @ p["w2"].T + p["b2"], 0.0)
    return h2 @ p["w3"].T + p["b3"]


# TODO(synk): training path (fit/Adam/MSELoss), reconstruct() weight patching,
# plotting and checkpoint saving are host-side utilities, not kernel work.

if __name__ == "__main__":
    key = jax.random.PRNGKey(0)
    k_x, k_p = jax.random.split(key)

    # Small shapes consistent with the module: batch=64, dim=64, bottleneck K=32, hidden H=256.
    B, dim, K, H = 64, 64, 32, 256
    x = jax.random.normal(k_x, (B, dim), dtype=jnp.float32)
    params = init_params(k_p, dim, K, H)

    # One-time weight prep (transpose + bf16 cast + lane-dense block-diag packing).
    prepared = prepare_params(params)

    ref = reference_forward(x, params)

    # Multi-step grid (rows=32, tile_rows=16 -> grid=(2,)): exercises DMA/compute
    # pipelining and the megacore "parallel" split.
    out = jax.block_until_ready(mlp_relu_ae_forward(x, prepared, tile_rows=16))
    assert out.shape == (B, dim)
    err = jnp.max(jnp.abs(out - ref))
    assert jnp.allclose(out, ref, atol=5e-2, rtol=5e-2), (
        f"mismatch vs reference (tile_rows=16), max abs err={err}"
    )

    # Auto tile selection path (VMEM-budget derived; rows//2 on v7x).
    out2 = jax.block_until_ready(mlp_relu_ae_forward(x, prepared))
    err2 = jnp.max(jnp.abs(out2 - ref))
    assert jnp.allclose(out2, ref, atol=5e-2, rtol=5e-2), (
        f"mismatch vs reference (auto tile_rows), max abs err={err2}"
    )

    print("KERNEL_OK")
</pallas_src>

<mosaic_0001>
module attributes {stable_mosaic.version = 11 : i64} {
  func.func @mlp_relu_ae_kernel(%arg0: i32, %arg1: memref<16x128xf32, #tpu.memory_space<vmem>>, %arg2: memref<128x64xbf16, #tpu.memory_space<vmem>>, %arg3: memref<1x64xf32, #tpu.memory_space<vmem>>, %arg4: memref<64x512xbf16, #tpu.memory_space<vmem>>, %arg5: memref<1x512xf32, #tpu.memory_space<vmem>>, %arg6: memref<512x128xbf16, #tpu.memory_space<vmem>>, %arg7: memref<1x128xf32, #tpu.memory_space<vmem>>, %arg8: memref<16x128xf32, #tpu.memory_space<vmem>>) attributes {dimension_semantics = [#tpu.dimension_semantics<parallel>], iteration_bounds = array<i64: 2>, scalar_prefetch = 0 : i64, scratch_operands = 0 : i64, tpu.core_type = #tpu.core_type<tc>, window_params = [{transform_indices = @transform_0, window_bounds = array<i64: 16, 128>}, {pipeline_mode = #tpu.pipeline_mode<synchronous>, transform_indices = @transform_1, window_bounds = array<i64: 128, 64>}, {pipeline_mode = #tpu.pipeline_mode<synchronous>, transform_indices = @transform_2, window_bounds = array<i64: 1, 64>}, {pipeline_mode = #tpu.pipeline_mode<synchronous>, transform_indices = @transform_3, window_bounds = array<i64: 64, 512>}, {pipeline_mode = #tpu.pipeline_mode<synchronous>, transform_indices = @transform_4, window_bounds = array<i64: 1, 512>}, {pipeline_mode = #tpu.pipeline_mode<synchronous>, transform_indices = @transform_5, window_bounds = array<i64: 512, 128>}, {pipeline_mode = #tpu.pipeline_mode<synchronous>, transform_indices = @transform_6, window_bounds = array<i64: 1, 128>}, {transform_indices = @transform_7, window_bounds = array<i64: 16, 128>}]} {
    %c0 = arith.constant 0 : index
    %c0_0 = arith.constant 0 : index
    %0 = vector.load %arg1[%c0, %c0_0] : memref<16x128xf32, #tpu.memory_space<vmem>>, vector<16x128xf32>
    %1 = arith.truncf %0 : vector<16x128xf32> to vector<16x128xbf16>
    %c0_1 = arith.constant 0 : index
    %c0_2 = arith.constant 0 : index
    %2 = vector.load %arg2[%c0_1, %c0_2] : memref<128x64xbf16, #tpu.memory_space<vmem>>, vector<128x64xbf16>
    %cst = arith.constant dense<0.000000e+00> : vector<16x64xf32>
    %3 = tpu.matmul %1, %2, %cst {dimension_numbers = #tpu.dot_dimension_numbers<[1], [0], [0], [1], [0, 0, 1, 1], [], []>} : vector<16x128xbf16>, vector<128x64xbf16>, vector<16x64xf32> -> vector<16x64xf32>
    %c0_3 = arith.constant 0 : index
    %c0_4 = arith.constant 0 : index
    %4 = vector.load %arg3[%c0_3, %c0_4] : memref<1x64xf32, #tpu.memory_space<vmem>>, vector<1x64xf32>
    %5 = vector.broadcast %4 : vector<1x64xf32> to vector<16x64xf32>
    %6 = arith.addf %3, %5 : vector<16x64xf32>
    %cst_5 = arith.constant 0.000000e+00 : f32
    %7 = vector.broadcast %cst_5 : f32 to vector<16x64xf32>
    %8 = arith.maximumf %6, %7 : vector<16x64xf32>
    %9 = arith.truncf %8 : vector<16x64xf32> to vector<16x64xbf16>
    %c0_6 = arith.constant 0 : index
    %c0_7 = arith.constant 0 : index
    %10 = vector.load %arg4[%c0_6, %c0_7] : memref<64x512xbf16, #tpu.memory_space<vmem>>, vector<64x512xbf16>
    %cst_8 = arith.constant dense<0.000000e+00> : vector<16x512xf32>
    %11 = tpu.matmul %9, %10, %cst_8 {dimension_numbers = #tpu.dot_dimension_numbers<[1], [0], [0], [1], [0, 0, 1, 1], [], []>} : vector<16x64xbf16>, vector<64x512xbf16>, vector<16x512xf32> -> vector<16x512xf32>
    %c0_9 = arith.constant 0 : index
    %c0_10 = arith.constant 0 : index
    %12 = vector.load %arg5[%c0_9, %c0_10] : memref<1x512xf32, #tpu.memory_space<vmem>>, vector<1x512xf32>
    %13 = vector.broadcast %12 : vector<1x512xf32> to vector<16x512xf32>
    %14 = arith.addf %11, %13 : vector<16x512xf32>
    %cst_11 = arith.constant 0.000000e+00 : f32
    %15 = vector.broadcast %cst_11 : f32 to vector<16x512xf32>
    %16 = arith.maximumf %14, %15 : vector<16x512xf32>
    %17 = arith.truncf %16 : vector<16x512xf32> to vector<16x512xbf16>
    %c0_12 = arith.constant 0 : index
    %c0_13 = arith.constant 0 : index
    %18 = vector.load %arg6[%c0_12, %c0_13] : memref<512x128xbf16, #tpu.memory_space<vmem>>, vector<512x128xbf16>
    %cst_14 = arith.constant dense<0.000000e+00> : vector<16x128xf32>
    %19 = tpu.matmul %17, %18, %cst_14 {dimension_numbers = #tpu.dot_dimension_numbers<[1], [0], [0], [1], [0, 0, 1, 1], [], []>} : vector<16x512xbf16>, vector<512x128xbf16>, vector<16x128xf32> -> vector<16x128xf32>
    %c0_15 = arith.constant 0 : index
    %c0_16 = arith.constant 0 : index
    %20 = vector.load %arg7[%c0_15, %c0_16] : memref<1x128xf32, #tpu.memory_space<vmem>>, vector<1x128xf32>
    %21 = vector.broadcast %20 : vector<1x128xf32> to vector<16x128xf32>
    %22 = arith.addf %19, %21 : vector<16x128xf32>
    %c0_17 = arith.constant 0 : index
    %c0_18 = arith.constant 0 : index
    %23 = vector.load %arg8[%c0_17, %c0_18] : memref<16x128xf32, #tpu.memory_space<vmem>>, vector<16x128xf32>
    tpu.vector_store %arg8[%c0_17, %c0_18], %22 {strides = array<i32>} : memref<16x128xf32, #tpu.memory_space<vmem>>, vector<16x128xf32>,
    return
  }
  func.func @transform_0(%arg0: i32) -> (i32, i32) {
    %c0_i32 = arith.constant 0 : i32
    %c0_i32_0 = arith.constant 0 : i32
    return %arg0, %c0_i32 : i32, i32
  }
  func.func @transform_1(%arg0: i32) -> (i32, i32) {
    %c0_i32 = arith.constant 0 : i32
    %c0_i32_0 = arith.constant 0 : i32
    %c0_i32_1 = arith.constant 0 : i32
    return %c0_i32, %c0_i32_0 : i32, i32
  }
  func.func @transform_2(%arg0: i32) -> (i32, i32) {
    %c0_i32 = arith.constant 0 : i32
    %c0_i32_0 = arith.constant 0 : i32
    %c0_i32_1 = arith.constant 0 : i32
    return %c0_i32, %c0_i32_0 : i32, i32
  }
  func.func @transform_3(%arg0: i32) -> (i32, i32) {
    %c0_i32 = arith.constant 0 : i32
    %c0_i32_0 = arith.constant 0 : i32
    %c0_i32_1 = arith.constant 0 : i32
    return %c0_i32, %c0_i32_0 : i32, i32
  }
  func.func @transform_4(%arg0: i32) -> (i32, i32) {
    %c0_i32 = arith.constant 0 : i32
    %c0_i32_0 = arith.constant 0 : i32
    %c0_i32_1 = arith.constant 0 : i32
    return %c0_i32, %c0_i32_0 : i32, i32
  }
  func.func @transform_5(%arg0: i32) -> (i32, i32) {
    %c0_i32 = arith.constant 0 : i32
    %c0_i32_0 = arith.constant 0 : i32
    %c0_i32_1 = arith.constant 0 : i32
    return %c0_i32, %c0_i32_0 : i32, i32
  }
  func.func @transform_6(%arg0: i32) -> (i32, i32) {
    %c0_i32 = arith.constant 0 : i32
    %c0_i32_0 = arith.constant 0 : i32
    %c0_i32_1 = arith.constant 0 : i32
    return %c0_i32, %c0_i32_0 : i32, i32
  }
  func.func @transform_7(%arg0: i32) -> (i32, i32) {
    %c0_i32 = arith.constant 0 : i32
    %c0_i32_0 = arith.constant 0 : i32
    return %arg0, %c0_i32 : i32, i32
  }
}

</mosaic_0001>

<llo_original>
// kernel: mlp_relu_ae_forward.1
$region0: #{mlp_relu_ae_forward.1}
  #allocation0 [shape = 'u32[]', space=smem, size = 0x4, offset = 0x4, fixed_abs, tag = 'smem constant byte address 0x4 - core index']
  #allocation1 [shape = 'u32[72,128]{1,0:T(1,128)}', space=vmem, size = 0x9000, scoped, tag = 'internal scratch']
  %s0 = inlined_call_operand.vmem [shape: f32[32,128], index: 0, kind: input, shape index: {}]
  %s1 = inlined_call_operand.vmem [shape: bf16[128,64], index: 1, kind: input, shape index: {}]
  %s2 = inlined_call_operand.vmem [shape: f32[1,64], index: 2, kind: input, shape index: {}]
  %s3 = inlined_call_operand.vmem [shape: bf16[64,512], index: 3, kind: input, shape index: {}]
  %s4 = inlined_call_operand.vmem [shape: f32[1,512], index: 4, kind: input, shape index: {}]
  %s5 = inlined_call_operand.hbm [shape: bf16[512,128], index: 5, kind: input, shape index: {}]
  %s6 = inlined_call_operand.vmem [shape: f32[1,128], index: 6, kind: input, shape index: {}]
  %s7 = inlined_call_operand.vmem [shape: f32[32,128], index: 7, kind: output, shape index: {}]
  %s8 = sld [smem:[#allocation0]]
  $region65: #{mlp_relu_ae_forward.1} parent=0
    _
  %s10 = ssub.s32 1, %s8
  %s11 = scalar_select 0, %s10, %s8
  $region1: #{mlp_relu_ae_forward.1} parent=0
    #allocation2 [shape = 'u8[131072]{0}', space=vmem, size = 0x20000, scoped, tag = 'input window, operand 5, single buffered']
    #allocation3 [shape = 's32[2]{0}', space=sflag, size = 0x8, scoped, tag = 'scoped memory for mlp_relu_ae_forward.1']
    %12 = vsyncpa [#allocation3], 0
    loop: start=0, step=1, limit=4
    $region2: #{mlp_relu_ae_forward.1} parent=1 // loop_pre_header
      _
    $region3: #{mlp_relu_ae_forward.1} parent=1 // loop_header
      %s14 = sphi 0, %s18
      %p15 = scmp.ge.s32.totalorder %s14, 4
      %s24 = sphi 0, %s26
      %s27 = sphi 0, %s24
      %s28 = sphi 0, %s27
      %s44 = sphi 0, %s28
      %s48 = sphi 0, %s48
      %s50 = sphi 0, %s48
      %s51 = sphi 0, %s50
      %s65 = sphi 0, %s51
      %s69 = sphi 0, %s69
      %s71 = sphi 0, %s69
      %s72 = sphi 0, %s71
      %s86 = sphi 0, %s72
      %s90 = sphi 0, %s90
      %s92 = sphi 0, %s90
      %s93 = sphi 0, %s92
      %s107 = sphi 0, %s93
      %s111 = sphi 0, %s111
      %s113 = sphi 0, %s111
      %s114 = sphi 0, %s113
      %s128 = sphi 0, %s114
      %s132 = sphi 0, %s132
      %s134 = sphi 0, %s132
      %s135 = sphi 0, %s134
      %s149 = sphi 0, %s135
      %s153 = sphi 0, %s153
      %s155 = sphi 0, %s153
      %s156 = sphi 0, %s155
      %s170 = sphi 0, %s156
      %s176 = sphi 0, %s178
      %s179 = sphi 0, %s176
      %s180 = sphi 0, %s179
      %s196 = sphi 0, %s180
    $region4: #{mlp_relu_ae_forward.1} parent=1 // loop_header_branch
      %17 = sbr.rel (%p15) target = $region8
    $region5: #{mlp_relu_ae_forward.1} parent=1 // loop_body
      %s19 = ssub.s32 %s14, 1
      %s20 = ssub.s32 %s14, 2
      %s21 = sadd.s32 %s14, 1
      %s22 = ssub.s32 %s14, %s21
      %p23 = scmp.eq.s32.totalorder %s22, 0
      %s25 = sadd.s32 %s24, 1
      %s26 = scalar_select %p23, %s24, %s25
      %p29 = pneg %p23
      %p30 = scmp.eq.s32.totalorder %s14, 1
      %p31 = por %p29, %p30
      %p32 = scmp.ne.s32.totalorder %s24, %s27
      %p33 = scmp.eq.s32.totalorder %s14, 0
      %p34 = por %p32, %p33
      %p35 = scmp.ne.s32.totalorder %s24, %s27
      %p36 = scmp.eq.s32.totalorder %s19, 1
      %p37 = por %p35, %p36
      %p38 = scmp.ne.s32.totalorder %s27, %s28
      %p39 = scmp.eq.s32.totalorder %s19, 0
      %p40 = por %p38, %p39
      %p41 = scmp.ne.s32.totalorder %s27, %s28
      %p42 = scmp.eq.s32.totalorder %s20, 1
      %p43 = por %p41, %p42
      %p45 = scmp.ne.s32.totalorder %s28, %s44
      %p46 = scmp.eq.s32.totalorder %s20, 0
      %p47 = por %p45, %p46
      %s49 = sadd.s32 %s48, 1
      %p52 = scmp.eq.s32.totalorder %s14, 1
      %p53 = scmp.ne.s32.totalorder %s48, %s50
      %p54 = scmp.eq.s32.totalorder %s14, 0
      %p55 = por %p53, %p54
      %p56 = scmp.ne.s32.totalorder %s48, %s50
      %p57 = scmp.eq.s32.totalorder %s19, 1
      %p58 = por %p56, %p57
      %p59 = scmp.ne.s32.totalorder %s50, %s51
      %p60 = scmp.eq.s32.totalorder %s19, 0
      %p61 = por %p59, %p60
      %p62 = scmp.ne.s32.totalorder %s50, %s51
      %p63 = scmp.eq.s32.totalorder %s20, 1
      %p64 = por %p62, %p63
      %p66 = scmp.ne.s32.totalorder %s51, %s65
      %p67 = scmp.eq.s32.totalorder %s20, 0
      %p68 = por %p66, %p67
      %s70 = sadd.s32 %s69, 1
      %p73 = scmp.eq.s32.totalorder %s14, 1
      %p74 = scmp.ne.s32.totalorder %s69, %s71
      %p75 = scmp.eq.s32.totalorder %s14, 0
      %p76 = por %p74, %p75
      %p77 = scmp.ne.s32.totalorder %s69, %s71
      %p78 = scmp.eq.s32.totalorder %s19, 1
      %p79 = por %p77, %p78
      %p80 = scmp.ne.s32.totalorder %s71, %s72
      %p81 = scmp.eq.s32.totalorder %s19, 0
      %p82 = por %p80, %p81
      %p83 = scmp.ne.s32.totalorder %s71, %s72
      %p84 = scmp.eq.s32.totalorder %s20, 1
      %p85 = por %p83, %p84
      %p87 = scmp.ne.s32.totalorder %s72, %s86
      %p88 = scmp.eq.s32.totalorder %s20, 0
      %p89 = por %p87, %p88
      %s91 = sadd.s32 %s90, 1
      %p94 = scmp.eq.s32.totalorder %s14, 1
      %p95 = scmp.ne.s32.totalorder %s90, %s92
      %p96 = scmp.eq.s32.totalorder %s14, 0
      %p97 = por %p95, %p96
      %p98 = scmp.ne.s32.totalorder %s90, %s92
      %p99 = scmp.eq.s32.totalorder %s19, 1
      %p100 = por %p98, %p99
      %p101 = scmp.ne.s32.totalorder %s92, %s93
      %p102 = scmp.eq.s32.totalorder %s19, 0
      %p103 = por %p101, %p102
      %p104 = scmp.ne.s32.totalorder %s92, %s93
      %p105 = scmp.eq.s32.totalorder %s20, 1
      %p106 = por %p104, %p105
      %p108 = scmp.ne.s32.totalorder %s93, %s107
      %p109 = scmp.eq.s32.totalorder %s20, 0
      %p110 = por %p108, %p109
      %s112 = sadd.s32 %s111, 1
      %p115 = scmp.eq.s32.totalorder %s14, 1
      %p116 = scmp.ne.s32.totalorder %s111, %s113
      %p117 = scmp.eq.s32.totalorder %s14, 0
      %p118 = por %p116, %p117
      %p119 = scmp.ne.s32.totalorder %s111, %s113
      %p120 = scmp.eq.s32.totalorder %s19, 1
      %p121 = por %p119, %p120
      %p122 = scmp.ne.s32.totalorder %s113, %s114
      %p123 = scmp.eq.s32.totalorder %s19, 0
      %p124 = por %p122, %p123
      %p125 = scmp.ne.s32.totalorder %s113, %s114
      %p126 = scmp.eq.s32.totalorder %s20, 1
      %p127 = por %p125, %p126
      %p129 = scmp.ne.s32.totalorder %s114, %s128
      %p130 = scmp.eq.s32.totalorder %s20, 0
      %p131 = por %p129, %p130
      %s133 = sadd.s32 %s132, 1
      %p136 = scmp.eq.s32.totalorder %s14, 1
      %p137 = scmp.ne.s32.totalorder %s132, %s134
      %p138 = scmp.eq.s32.totalorder %s14, 0
      %p139 = por %p137, %p138
      %p140 = scmp.ne.s32.totalorder %s132, %s134
      %p141 = scmp.eq.s32.totalorder %s19, 1
      %p142 = por %p140, %p141
      %p143 = scmp.ne.s32.totalorder %s134, %s135
      %p144 = scmp.eq.s32.totalorder %s19, 0
      %p145 = por %p143, %p144
      %p146 = scmp.ne.s32.totalorder %s134, %s135
      %p147 = scmp.eq.s32.totalorder %s20, 1
      %p148 = por %p146, %p147
      %p150 = scmp.ne.s32.totalorder %s135, %s149
      %p151 = scmp.eq.s32.totalorder %s20, 0
      %p152 = por %p150, %p151
      %s154 = sadd.s32 %s153, 1
      %p157 = scmp.eq.s32.totalorder %s14, 1
      %p158 = scmp.ne.s32.totalorder %s153, %s155
      %p159 = scmp.eq.s32.totalorder %s14, 0
      %p160 = por %p158, %p159
      %p161 = scmp.ne.s32.totalorder %s153, %s155
      %p162 = scmp.eq.s32.totalorder %s19, 1
      %p163 = por %p161, %p162
      %p164 = scmp.ne.s32.totalorder %s155, %s156
      %p165 = scmp.eq.s32.totalorder %s19, 0
      %p166 = por %p164, %p165
      %p167 = scmp.ne.s32.totalorder %s155, %s156
      %p168 = scmp.eq.s32.totalorder %s20, 1
      %p169 = por %p167, %p168
      %p171 = scmp.ne.s32.totalorder %s156, %s170
      %p172 = scmp.eq.s32.totalorder %s20, 0
      %p173 = por %p171, %p172
      %s174 = ssub.s32 %s14, %s21
      %p175 = scmp.eq.s32.totalorder %s174, 0
      %s177 = sadd.s32 %s176, 1
      %s178 = scalar_select %p175, %s176, %s177
      %p181 = pneg %p175
      %p182 = scmp.eq.s32.totalorder %s14, 1
      %p183 = por %p181, %p182
      %p184 = scmp.ne.s32.totalorder %s176, %s179
      %p185 = scmp.eq.s32.totalorder %s14, 0
      %p186 = por %p184, %p185
      %p187 = scmp.ne.s32.totalorder %s176, %s179
      %p188 = scmp.eq.s32.totalorder %s19, 1
      %p189 = por %p187, %p188
      %p190 = scmp.ne.s32.totalorder %s179, %s180
      %p191 = scmp.eq.s32.totalorder %s19, 0
      %p192 = por %p190, %p191
      %p193 = scmp.ne.s32.totalorder %s179, %s180
      %p194 = scmp.eq.s32.totalorder %s20, 1
      %p195 = por %p193, %p194
      %p197 = scmp.ne.s32.totalorder %s180, %s196
      %p198 = scmp.eq.s32.totalorder %s20, 0
      %p199 = por %p197, %p198
      %p200 = scmp.le.s32.totalorder 1, %s14
      %p201 = scmp.lt.s32.totalorder %s14, 3
      %p202 = pnand %p200, %p201
      %p203 = pneg %p202
      // Predicated region
      $region9: #{mlp_relu_ae_forward.1} parent=5 // pred_check
        _
      $region10: #{mlp_relu_ae_forward.1} parent=5 // pred_check_branch
        %205 = sbr.rel (%p202) target = $region12
      $region11: #{mlp_relu_ae_forward.1} parent=5 // pred_region
        %s206 = ssub.s32 %s14, 1
        // Predicated region
        $region13: #{mlp_relu_ae_forward.1} parent=11 // pred_check
          %p207 = pneg %p61
        $region14: #{mlp_relu_ae_forward.1} parent=11 // pred_check_branch
          %209 = sbr.rel (%p207) target = $region16
        $region15: #{mlp_relu_ae_forward.1} parent=11 // pred_region
          _
        $region16: #{mlp_relu_ae_forward.1} parent=11 // pred_fallthru
          _
        // Predicated region
        $region17: #{mlp_relu_ae_forward.1} parent=11 // pred_check
          %p210 = pneg %p82
        $region18: #{mlp_relu_ae_forward.1} parent=11 // pred_check_branch
          %212 = sbr.rel (%p210) target = $region20
        $region19: #{mlp_relu_ae_forward.1} parent=11 // pred_region
          _
        $region20: #{mlp_relu_ae_forward.1} parent=11 // pred_fallthru
          _
        // Predicated region
        $region21: #{mlp_relu_ae_forward.1} parent=11 // pred_check
          %p213 = pneg %p103
        $region22: #{mlp_relu_ae_forward.1} parent=11 // pred_check_branch
          %215 = sbr.rel (%p213) target = $region24
        $region23: #{mlp_relu_ae_forward.1} parent=11 // pred_region
          _
        $region24: #{mlp_relu_ae_forward.1} parent=11 // pred_fallthru
          _
        // Predicated region
        $region25: #{mlp_relu_ae_forward.1} parent=11 // pred_check
          %p216 = pneg %p124
        $region26: #{mlp_relu_ae_forward.1} parent=11 // pred_check_branch
          %218 = sbr.rel (%p216) target = $region28
        $region27: #{mlp_relu_ae_forward.1} parent=11 // pred_region
          _
        $region28: #{mlp_relu_ae_forward.1} parent=11 // pred_fallthru
          _
        // Predicated region
        $region29: #{mlp_relu_ae_forward.1} parent=11 // pred_check
          %p219 = pneg %p145
        $region30: #{mlp_relu_ae_forward.1} parent=11 // pred_check_branch
          %221 = sbr.rel (%p219) target = $region32
        $region31: #{mlp_relu_ae_forward.1} parent=11 // pred_region
          %223 = vsyncadd [#allocation3], 0
          %s224 = sshll.u32 %s5, 4
          %s225 = int_to_ptr.hbm [resolvable:$true] %s224
          %s226 = sshll.u32 [#allocation2], 4
          %s227 = int_to_ptr.vmem [resolvable:$true] %s226
          %232 = dma.hbm_to_vmem [thread:$0]  %s225, 4096, %s227, [#allocation3], 64, 64, 4
        $region32: #{mlp_relu_ae_forward.1} parent=11 // pred_fallthru
          _
        // Predicated region
        $region33: #{mlp_relu_ae_forward.1} parent=11 // pred_check
          %p233 = pneg %p166
        $region34: #{mlp_relu_ae_forward.1} parent=11 // pred_check_branch
          %235 = sbr.rel (%p233) target = $region36
        $region35: #{mlp_relu_ae_forward.1} parent=11 // pred_region
          _
        $region36: #{mlp_relu_ae_forward.1} parent=11 // pred_fallthru
          _
      $region12: #{mlp_relu_ae_forward.1} parent=5 // pred_fallthru
        _
      %p236 = scmp.lt.s32.totalorder %s14, 2
      // Predicated region
      $region37: #{mlp_relu_ae_forward.1} parent=5 // pred_check
        %p237 = pneg %p236
      $region38: #{mlp_relu_ae_forward.1} parent=5 // pred_check_branch
        %239 = sbr.rel (%p237) target = $region40
      $region39: #{mlp_relu_ae_forward.1} parent=5 // pred_region
        // Predicated region
        $region41: #{mlp_relu_ae_forward.1} parent=39 // pred_check
          %p240 = pneg %p34
        $region42: #{mlp_relu_ae_forward.1} parent=39 // pred_check_branch
          %242 = sbr.rel (%p240) target = $region44
        $region43: #{mlp_relu_ae_forward.1} parent=39 // pred_region
          %s243 = smul.u32 2, %s14
          %p244 = scmp.lt.s32.totalorder %s243, 3
          %s245 = scalar_select %p244, %s243, 3
          %s246 = smul.addr %s245, 8
          %s247 = scalar_lea.vmem %s0, %s246
          %s248 = smul.u32 2, %s14
        $region44: #{mlp_relu_ae_forward.1} parent=39 // pred_fallthru
          _
      $region40: #{mlp_relu_ae_forward.1} parent=5 // pred_fallthru
        _
      %p249 = scmp.le.s32.totalorder 1, %s14
      %p250 = scmp.lt.s32.totalorder %s14, 3
      %p251 = pnand %p249, %p250
      %p252 = pneg %p251
      // Predicated region
      $region45: #{mlp_relu_ae_forward.1} parent=5 // pred_check
        _
      $region46: #{mlp_relu_ae_forward.1} parent=5 // pred_check_branch
        %254 = sbr.rel (%p251) target = $region48
      $region47: #{mlp_relu_ae_forward.1} parent=5 // pred_region
        %s255 = ssub.s32 %s14, 1
        // Predicated region
        $region49: #{mlp_relu_ae_forward.1} parent=47 // pred_check
          %p256 = pneg %p145
        $region50: #{mlp_relu_ae_forward.1} parent=47 // pred_check_branch
          %258 = sbr.rel (%p256) target = $region52
        $region51: #{mlp_relu_ae_forward.1} parent=47 // pred_region
          %260 = dma.done [#allocation3], 4096
        $region52: #{mlp_relu_ae_forward.1} parent=47 // pred_fallthru
          _
        %s261 = smul.u32 2, %s19
        %p262 = scmp.lt.s32.totalorder %s261, 3
        %s263 = scalar_select %p262, %s261, 3
        %s264 = smul.addr %s263, 8
        %s265 = scalar_lea.vmem %s0, %s264
        %p266 = pneg %p40
        %p267 = pneg %p37
        %p268 = pneg %p61
        %p269 = pneg %p58
        %p270 = pneg %p82
        %p271 = pneg %p79
        %p272 = pneg %p103
        %p273 = pneg %p100
        %p274 = pneg %p124
        %p275 = pneg %p121
        %p276 = pneg %p145
        %p277 = pneg %p142
        %p278 = pneg %p166
        %p279 = pneg %p163
        %p280 = pneg %p192
        %p281 = pneg %p189
        %s282 = smul.u32 2, %s19
        %p283 = scmp.lt.s32.totalorder %s282, 3
        %s284 = scalar_select %p283, %s282, 3
        %s285 = smul.addr %s284, 8
        %s286 = scalar_lea.vmem %s7, %s285
        %s287 = smul.u32 2, %s19
        %p288 = scmp.lt.s32.totalorder %s287, 3
        %s289 = scalar_select %p288, %s287, 3
        %s290 = smul.addr %s289, 8
        %s291 = scalar_lea.vmem %s0, %s290
        %s292 = smul.u32 2, %s19
        %s293 = smul.u32 2, %s19
        %p294 = scmp.lt.s32.totalorder %s293, 3
        %s295 = scalar_select %p294, %s293, 3
        %s296 = smul.addr %s295, 8
        %s297 = scalar_lea.vmem %s7, %s296
        %s298 = smul.u32 2, %s19
        %v300 = vld [vmem:[%s291] sm:$0xff]
        %v301 = vld [vmem:[%s291 + $0x8] sm:$0xff]
        %v302 = vpack.c.bf16 %v301, %v300
        %v303 = vld [vmem:[%s1] sm:$0xf]
        %v304 = vld [vmem:[%s1 + $0x4] sm:$0xf]
        %v305 = vld [vmem:[%s1 + $0x8] sm:$0xf]
        %v306 = vld [vmem:[%s1 + $0xc] sm:$0xf]
        %v307 = vld [vmem:[%s1 + $0x10] sm:$0xf]
        %v308 = vld [vmem:[%s1 + $0x14] sm:$0xf]
        %v309 = vld [vmem:[%s1 + $0x18] sm:$0xf]
        %v310 = vld [vmem:[%s1 + $0x1c] sm:$0xf]
        %v311 = vld [vmem:[%s1 + $0x20] sm:$0xf]
        %v312 = vld [vmem:[%s1 + $0x24] sm:$0xf]
        %v313 = vld [vmem:[%s1 + $0x28] sm:$0xf]
        %v314 = vld [vmem:[%s1 + $0x2c] sm:$0xf]
        %v315 = vld [vmem:[%s1 + $0x30] sm:$0xf]
        %v316 = vld [vmem:[%s1 + $0x34] sm:$0xf]
        %v317 = vld [vmem:[%s1 + $0x38] sm:$0xf]
        %v318 = vld [vmem:[%s1 + $0x3c] sm:$0xf]
        %v319 = vld [vmem:[%s2] sm:$0x1]
        %v321 = vperm.slane %v319, 0
        %v339 = vunpack.c.l.b16 %v303
        %v340 = vunpack.c.l.b16 %v304
        %v341 = vunpack.c.l.b16 %v305
        %v342 = vunpack.c.l.b16 %v306
        %v343 = vunpack.c.l.b16 %v307
        %v344 = vunpack.c.l.b16 %v308
        %v345 = vunpack.c.l.b16 %v309
        %v346 = vunpack.c.l.b16 %v310
        %v347 = vunpack.c.l.b16 %v311
        %v348 = vunpack.c.l.b16 %v312
        %v349 = vunpack.c.l.b16 %v313
        %v350 = vunpack.c.l.b16 %v314
        %v351 = vunpack.c.l.b16 %v315
        %v352 = vunpack.c.l.b16 %v316
        %v353 = vunpack.c.l.b16 %v317
        %v354 = vunpack.c.l.b16 %v318
        %v355 = vpack.c.b16 %v340, %v339
        %v356 = vpack.c.b16 %v342, %v341
        %v357 = vpack.c.b16 %v344, %v343
        %v358 = vpack.c.b16 %v346, %v345
        %v359 = vpack.c.b16 %v348, %v347
        %v360 = vpack.c.b16 %v350, %v349
        %v361 = vpack.c.b16 %v352, %v351
        %v362 = vpack.c.b16 %v354, %v353
        %371 = vmatpush.bf16.msra.mxu0 %v362
        %372 = vmatpush.bf16.msra.mxu0 %v361
        %373 = vmatpush.bf16.msra.mxu0 %v360
        %374 = vmatpush.bf16.msra.mxu0 %v359
        %375 = vmatpush.bf16.msra.mxu0 %v358
        %376 = vmatpush.bf16.msra.mxu0 %v357
        %377 = vmatpush.bf16.msra.mxu0 %v356
        %378 = vmatpush.bf16.msra.mxu0 %v355
        %379 = vmatmul.bf16.gmra.mxu0 %v302
        %v380 = vpop.f32.mrf.mxu0
        %v381 = vadd.f32 %v321, %v380
        %v382 = vpop.f32.mrf.mxu0
        %v383 = vadd.f32 %v321, %v382
        %384 = vdwg.mxu0
        %v385 = vmax.f32 %v381, 0.0
        %v386 = vmax.f32 %v383, 0.0
        %v387 = vpack.c.bf16 %v386, %v385
        %v388 = vld [vmem:[%s3] sm:$0xff]
        %v389 = vld [vmem:[%s3 + $0x8] sm:$0xff]
        %v390 = vld [vmem:[%s3 + $0x10] sm:$0xff]
        %v391 = vld [vmem:[%s3 + $0x18] sm:$0xff]
        %v392 = vld [vmem:[%s3 + $0x20] sm:$0xff]
        %v393 = vld [vmem:[%s3 + $0x28] sm:$0xff]
        %v394 = vld [vmem:[%s3 + $0x30] sm:$0xff]
        %v395 = vld [vmem:[%s3 + $0x38] sm:$0xff]
        %v396 = vld [vmem:[%s3 + $0x40] sm:$0xff]
        %v397 = vld [vmem:[%s3 + $0x48] sm:$0xff]
        %v398 = vld [vmem:[%s3 + $0x50] sm:$0xff]
        %v399 = vld [vmem:[%s3 + $0x58] sm:$0xff]
        %v400 = vld [vmem:[%s3 + $0x60] sm:$0xff]
        %v401 = vld [vmem:[%s3 + $0x68] sm:$0xff]
        %v402 = vld [vmem:[%s3 + $0x70] sm:$0xff]
        %v403 = vld [vmem:[%s3 + $0x78] sm:$0xff]
        %v404 = vld [vmem:[%s4] sm:$0xf]
        %v406 = vperm.slane %v404, 0
        %v407 = vperm.slane %v404, 1
        %v408 = vperm.slane %v404, 2
        %v409 = vperm.slane %v404, 3
        %v430 = vunpack.c.l.b16 %v388
        %v431 = vunpack.c.h.b16 %v388
        %v432 = vunpack.c.l.b16 %v389
        %v433 = vunpack.c.h.b16 %v389
        %v434 = vunpack.c.l.b16 %v390
        %v435 = vunpack.c.h.b16 %v390
        %v436 = vunpack.c.l.b16 %v391
        %v437 = vunpack.c.h.b16 %v391
        %v438 = vunpack.c.l.b16 %v392
        %v439 = vunpack.c.h.b16 %v392
        %v440 = vunpack.c.l.b16 %v393
        %v441 = vunpack.c.h.b16 %v393
        %v442 = vunpack.c.l.b16 %v394
        %v443 = vunpack.c.h.b16 %v394
        %v444 = vunpack.c.l.b16 %v395
        %v445 = vunpack.c.h.b16 %v395
        %v446 = vunpack.c.l.b16 %v396
        %v447 = vunpack.c.h.b16 %v396
        %v448 = vunpack.c.l.b16 %v397
        %v449 = vunpack.c.h.b16 %v397
        %v450 = vunpack.c.l.b16 %v398
        %v451 = vunpack.c.h.b16 %v398
        %v452 = vunpack.c.l.b16 %v399
        %v453 = vunpack.c.h.b16 %v399
        %v454 = vunpack.c.l.b16 %v400
        %v455 = vunpack.c.h.b16 %v400
        %v456 = vunpack.c.l.b16 %v401
        %v457 = vunpack.c.h.b16 %v401
        %v458 = vunpack.c.l.b16 %v402
        %v459 = vunpack.c.h.b16 %v402
        %v460 = vunpack.c.l.b16 %v403
        %v461 = vunpack.c.h.b16 %v403
        %v462 = vpack.c.b16 %v434, %v430
        %v463 = vpack.c.b16 %v435, %v431
        %v464 = vpack.c.b16 %v436, %v432
        %v465 = vpack.c.b16 %v437, %v433
        %v466 = vpack.c.b16 %v442, %v438
        %v467 = vpack.c.b16 %v443, %v439
        %v468 = vpack.c.b16 %v444, %v440
        %v469 = vpack.c.b16 %v445, %v441
        %v470 = vpack.c.b16 %v450, %v446
        %v471 = vpack.c.b16 %v451, %v447
        %v472 = vpack.c.b16 %v452, %v448
        %v473 = vpack.c.b16 %v453, %v449
        %v474 = vpack.c.b16 %v458, %v454
        %v475 = vpack.c.b16 %v459, %v455
        %v476 = vpack.c.b16 %v460, %v456
        %v477 = vpack.c.b16 %v461, %v457
        %vm494 = vcmask 523264
        %v496 = vsel %vm494, %v387, 0
        %498 = vmatpush.bf16.msra.mxu0 0
        %499 = vmatpush.bf16.msra.mxu0 0
        %500 = vmatpush.bf16.msra.mxu0 0
        %501 = vmatpush.bf16.msra.mxu0 0
        %502 = vmatpush.bf16.msra.mxu0 %v474
        %503 = vmatpush.bf16.msra.mxu0 %v470
        %504 = vmatpush.bf16.msra.mxu0 %v466
        %505 = vmatpush.bf16.msra.mxu0 %v462
        %506 = vmatmul.bf16.gmra.mxu0 %v496
        %v507 = vpop.f32.mrf.mxu0
        %v508 = vadd.f32 %v406, %v507
        %v509 = vpop.f32.mrf.mxu0
        %v510 = vadd.f32 %v406, %v509
        %511 = vdwg.mxu0
        %512 = vmatpush.bf16.msra.mxu0 0
        %513 = vmatpush.bf16.msra.mxu0 0
        %514 = vmatpush.bf16.msra.mxu0 0
        %515 = vmatpush.bf16.msra.mxu0 0
        %516 = vmatpush.bf16.msra.mxu0 %v475
        %517 = vmatpush.bf16.msra.mxu0 %v471
        %518 = vmatpush.bf16.msra.mxu0 %v467
        %519 = vmatpush.bf16.msra.mxu0 %v463
        %520 = vmatmul.bf16.gmra.mxu0 %v496
        %v521 = vpop.f32.mrf.mxu0
        %v522 = vadd.f32 %v407, %v521
        %v523 = vpop.f32.mrf.mxu0
        %v524 = vadd.f32 %v407, %v523
        %525 = vdwg.mxu0
        %526 = vmatpush.bf16.msra.mxu0 0
        %527 = vmatpush.bf16.msra.mxu0 0
        %528 = vmatpush.bf16.msra.mxu0 0
        %529 = vmatpush.bf16.msra.mxu0 0
        %530 = vmatpush.bf16.msra.mxu0 %v476
        %531 = vmatpush.bf16.msra.mxu0 %v472
        %532 = vmatpush.bf16.msra.mxu0 %v468
        %533 = vmatpush.bf16.msra.mxu0 %v464
        %534 = vmatmul.bf16.gmra.mxu0 %v496
        %v535 = vpop.f32.mrf.mxu0
        %v536 = vadd.f32 %v408, %v535
        %v537 = vpop.f32.mrf.mxu0
        %v538 = vadd.f32 %v408, %v537
        %539 = vdwg.mxu0
        %540 = vmatpush.bf16.msra.mxu0 0
        %541 = vmatpush.bf16.msra.mxu0 0
        %542 = vmatpush.bf16.msra.mxu0 0
        %543 = vmatpush.bf16.msra.mxu0 0
        %544 = vmatpush.bf16.msra.mxu0 %v477
        %545 = vmatpush.bf16.msra.mxu0 %v473
        %546 = vmatpush.bf16.msra.mxu0 %v469
        %547 = vmatpush.bf16.msra.mxu0 %v465
        %548 = vmatmul.bf16.gmra.mxu0 %v496
        %v549 = vpop.f32.mrf.mxu0
        %v550 = vadd.f32 %v409, %v549
        %v551 = vpop.f32.mrf.mxu0
        %v552 = vadd.f32 %v409, %v551
        %553 = vdwg.mxu0
        %v554 = vmax.f32 %v508, 0.0
        %v555 = vmax.f32 %v522, 0.0
        %v556 = vmax.f32 %v536, 0.0
        %v557 = vmax.f32 %v550, 0.0
        %v558 = vmax.f32 %v510, 0.0
        %v559 = vmax.f32 %v524, 0.0
        %v560 = vmax.f32 %v538, 0.0
        %v561 = vmax.f32 %v552, 0.0
        %v562 = vpack.c.bf16 %v558, %v554
        %v563 = vpack.c.bf16 %v559, %v555
        %v564 = vpack.c.bf16 %v560, %v556
        %v565 = vpack.c.bf16 %v561, %v557
        %v566 = vld [vmem:[#allocation2] sm:$0xf]
        %v567 = vld [vmem:[#allocation2 + $0x4] sm:$0xf]
        %v568 = vld [vmem:[#allocation2 + $0x8] sm:$0xf]
        %v569 = vld [vmem:[#allocation2 + $0xc] sm:$0xf]
        %v570 = vld [vmem:[#allocation2 + $0x10] sm:$0xf]
        %v571 = vld [vmem:[#allocation2 + $0x14] sm:$0xf]
        %v572 = vld [vmem:[#allocation2 + $0x18] sm:$0xf]
        %v573 = vld [vmem:[#allocation2 + $0x1c] sm:$0xf]
        %v574 = vld [vmem:[#allocation2 + $0x20] sm:$0xf]
        %v575 = vld [vmem:[#allocation2 + $0x24] sm:$0xf]
        %v576 = vld [vmem:[#allocation2 + $0x28] sm:$0xf]
        %v577 = vld [vmem:[#allocation2 + $0x2c] sm:$0xf]
        %v578 = vld [vmem:[#allocation2 + $0x30] sm:$0xf]
        %v579 = vld [vmem:[#allocation2 + $0x34] sm:$0xf]
        %v580 = vld [vmem:[#allocation2 + $0x38] sm:$0xf]
        %v581 = vld [vmem:[#allocation2 + $0x3c] sm:$0xf]
        %v582 = vld [vmem:[#allocation2 + $0x40] sm:$0xf]
        %v583 = vld [vmem:[#allocation2 + $0x44] sm:$0xf]
        %v584 = vld [vmem:[#allocation2 + $0x48] sm:$0xf]
        %v585 = vld [vmem:[#allocation2 + $0x4c] sm:$0xf]
        %v586 = vld [vmem:[#allocation2 + $0x50] sm:$0xf]
        %v587 = vld [vmem:[#allocation2 + $0x54] sm:$0xf]
        %v588 = vld [vmem:[#allocation2 + $0x58] sm:$0xf]
        %v589 = vld [vmem:[#allocation2 + $0x5c] sm:$0xf]
        %v590 = vld [vmem:[#allocation2 + $0x60] sm:$0xf]
        %v591 = vld [vmem:[#allocation2 + $0x64] sm:$0xf]
        %v592 = vld [vmem:[#allocation2 + $0x68] sm:$0xf]
        %v593 = vld [vmem:[#allocation2 + $0x6c] sm:$0xf]
        %v594 = vld [vmem:[#allocation2 + $0x70] sm:$0xf]
        %v595 = vld [vmem:[#allocation2 + $0x74] sm:$0xf]
        %v596 = vld [vmem:[#allocation2 + $0x78] sm:$0xf]
        %v597 = vld [vmem:[#allocation2 + $0x7c] sm:$0xf]
        %v598 = vld [vmem:[#allocation2 + $0x80] sm:$0xf]
        %v599 = vld [vmem:[#allocation2 + $0x84] sm:$0xf]
        %v600 = vld [vmem:[#allocation2 + $0x88] sm:$0xf]
        %v601 = vld [vmem:[#allocation2 + $0x8c] sm:$0xf]
        %v602 = vld [vmem:[#allocation2 + $0x90] sm:$0xf]
        %v603 = vld [vmem:[#allocation2 + $0x94] sm:$0xf]
        %v604 = vld [vmem:[#allocation2 + $0x98] sm:$0xf]
        %v605 = vld [vmem:[#allocation2 + $0x9c] sm:$0xf]
        %v606 = vld [vmem:[#allocation2 + $0xa0] sm:$0xf]
        %v607 = vld [vmem:[#allocation2 + $0xa4] sm:$0xf]
        %v608 = vld [vmem:[#allocation2 + $0xa8] sm:$0xf]
        %v609 = vld [vmem:[#allocation2 + $0xac] sm:$0xf]
        %v610 = vld [vmem:[#allocation2 + $0xb0] sm:$0xf]
        %v611 = vld [vmem:[#allocation2 + $0xb4] sm:$0xf]
        %v612 = vld [vmem:[#allocation2 + $0xb8] sm:$0xf]
        %v613 = vld [vmem:[#allocation2 + $0xbc] sm:$0xf]
        %v614 = vld [vmem:[#allocation2 + $0xc0] sm:$0xf]
        %v615 = vld [vmem:[#allocation2 + $0xc4] sm:$0xf]
        %v616 = vld [vmem:[#allocation2 + $0xc8] sm:$0xf]
        %v617 = vld [vmem:[#allocation2 + $0xcc] sm:$0xf]
        %v618 = vld [vmem:[#allocation2 + $0xd0] sm:$0xf]
        %v619 = vld [vmem:[#allocation2 + $0xd4] sm:$0xf]
        %v620 = vld [vmem:[#allocation2 + $0xd8] sm:$0xf]
        %v621 = vld [vmem:[#allocation2 + $0xdc] sm:$0xf]
        %v622 = vld [vmem:[#allocation2 + $0xe0] sm:$0xf]
        %v623 = vld [vmem:[#allocation2 + $0xe4] sm:$0xf]
        %v624 = vld [vmem:[#allocation2 + $0xe8] sm:$0xf]
        %v625 = vld [vmem:[#allocation2 + $0xec] sm:$0xf]
        %v626 = vld [vmem:[#allocation2 + $0xf0] sm:$0xf]
        %v627 = vld [vmem:[#allocation2 + $0xf4] sm:$0xf]
        %v628 = vld [vmem:[#allocation2 + $0xf8] sm:$0xf]
        %v629 = vld [vmem:[#allocation2 + $0xfc] sm:$0xf]
        %v630 = vld [vmem:[%s6] sm:$0x1]
        %v632 = vperm.slane %v630, 0
        %v698 = vunpack.c.l.b16 %v566
        %v699 = vunpack.c.l.b16 %v567
        %v700 = vunpack.c.l.b16 %v568
        %v701 = vunpack.c.l.b16 %v569
        %v702 = vunpack.c.l.b16 %v570
        %v703 = vunpack.c.l.b16 %v571
        %v704 = vunpack.c.l.b16 %v572
        %v705 = vunpack.c.l.b16 %v573
        %v706 = vunpack.c.l.b16 %v574
        %v707 = vunpack.c.l.b16 %v575
        %v708 = vunpack.c.l.b16 %v576
        %v709 = vunpack.c.l.b16 %v577
        %v710 = vunpack.c.l.b16 %v578
        %v711 = vunpack.c.l.b16 %v579
        %v712 = vunpack.c.l.b16 %v580
        %v713 = vunpack.c.l.b16 %v581
        %v714 = vunpack.c.l.b16 %v582
        %v715 = vunpack.c.l.b16 %v583
        %v716 = vunpack.c.l.b16 %v584
        %v717 = vunpack.c.l.b16 %v585
        %v718 = vunpack.c.l.b16 %v586
        %v719 = vunpack.c.l.b16 %v587
        %v720 = vunpack.c.l.b16 %v588
        %v721 = vunpack.c.l.b16 %v589
        %v722 = vunpack.c.l.b16 %v590
        %v723 = vunpack.c.l.b16 %v591
        %v724 = vunpack.c.l.b16 %v592
        %v725 = vunpack.c.l.b16 %v593
        %v726 = vunpack.c.l.b16 %v594
        %v727 = vunpack.c.l.b16 %v595
        %v728 = vunpack.c.l.b16 %v596
        %v729 = vunpack.c.l.b16 %v597
        %v730 = vunpack.c.l.b16 %v598
        %v731 = vunpack.c.l.b16 %v599
        %v732 = vunpack.c.l.b16 %v600
        %v733 = vunpack.c.l.b16 %v601
        %v734 = vunpack.c.l.b16 %v602
        %v735 = vunpack.c.l.b16 %v603
        %v736 = vunpack.c.l.b16 %v604
        %v737 = vunpack.c.l.b16 %v605
        %v738 = vunpack.c.l.b16 %v606
        %v739 = vunpack.c.l.b16 %v607
        %v740 = vunpack.c.l.b16 %v608
        %v741 = vunpack.c.l.b16 %v609
        %v742 = vunpack.c.l.b16 %v610
        %v743 = vunpack.c.l.b16 %v611
        %v744 = vunpack.c.l.b16 %v612
        %v745 = vunpack.c.l.b16 %v613
        %v746 = vunpack.c.l.b16 %v614
        %v747 = vunpack.c.l.b16 %v615
        %v748 = vunpack.c.l.b16 %v616
        %v749 = vunpack.c.l.b16 %v617
        %v750 = vunpack.c.l.b16 %v618
        %v751 = vunpack.c.l.b16 %v619
        %v752 = vunpack.c.l.b16 %v620
        %v753 = vunpack.c.l.b16 %v621
        %v754 = vunpack.c.l.b16 %v622
        %v755 = vunpack.c.l.b16 %v623
        %v756 = vunpack.c.l.b16 %v624
        %v757 = vunpack.c.l.b16 %v625
        %v758 = vunpack.c.l.b16 %v626
        %v759 = vunpack.c.l.b16 %v627
        %v760 = vunpack.c.l.b16 %v628
        %v761 = vunpack.c.l.b16 %v629
        %v762 = vpack.c.b16 %v699, %v698
        %v763 = vpack.c.b16 %v701, %v700
        %v764 = vpack.c.b16 %v703, %v702
        %v765 = vpack.c.b16 %v705, %v704
        %v766 = vpack.c.b16 %v707, %v706
        %v767 = vpack.c.b16 %v709, %v708
        %v768 = vpack.c.b16 %v711, %v710
        %v769 = vpack.c.b16 %v713, %v712
        %v770 = vpack.c.b16 %v715, %v714
        %v771 = vpack.c.b16 %v717, %v716
        %v772 = vpack.c.b16 %v719, %v718
        %v773 = vpack.c.b16 %v721, %v720
        %v774 = vpack.c.b16 %v723, %v722
        %v775 = vpack.c.b16 %v725, %v724
        %v776 = vpack.c.b16 %v727, %v726
        %v777 = vpack.c.b16 %v729, %v728
        %v778 = vpack.c.b16 %v731, %v730
        %v779 = vpack.c.b16 %v733, %v732
        %v780 = vpack.c.b16 %v735, %v734
        %v781 = vpack.c.b16 %v737, %v736
        %v782 = vpack.c.b16 %v739, %v738
        %v783 = vpack.c.b16 %v741, %v740
        %v784 = vpack.c.b16 %v743, %v742
        %v785 = vpack.c.b16 %v745, %v744
        %v786 = vpack.c.b16 %v747, %v746
        %v787 = vpack.c.b16 %v749, %v748
        %v788 = vpack.c.b16 %v751, %v750
        %v789 = vpack.c.b16 %v753, %v752
        %v790 = vpack.c.b16 %v755, %v754
        %v791 = vpack.c.b16 %v757, %v756
        %v792 = vpack.c.b16 %v759, %v758
        %v793 = vpack.c.b16 %v761, %v760
        %826 = vmatpush.bf16.msra.mxu0 %v769
        %827 = vmatpush.bf16.msra.mxu0 %v768
        %828 = vmatpush.bf16.msra.mxu0 %v767
        %829 = vmatpush.bf16.msra.mxu0 %v766
        %830 = vmatpush.bf16.msra.mxu0 %v765
        %831 = vmatpush.bf16.msra.mxu0 %v764
        %832 = vmatpush.bf16.msra.mxu0 %v763
        %833 = vmatpush.bf16.msra.mxu0 %v762
        %834 = vmatmul.bf16.gmra.mxu0 %v562
        %v835 = vpop.f32.mrf.mxu0
        %v836 = vadd.f32 %v632, %v835
        %v837 = vpop.f32.mrf.mxu0
        %v838 = vadd.f32 %v632, %v837
        %839 = vdwg.mxu0
        %840 = vmatpush.bf16.msra.mxu0 %v777
        %841 = vmatpush.bf16.msra.mxu0 %v776
        %842 = vmatpush.bf16.msra.mxu0 %v775
        %843 = vmatpush.bf16.msra.mxu0 %v774
        %844 = vmatpush.bf16.msra.mxu0 %v773
        %845 = vmatpush.bf16.msra.mxu0 %v772
        %846 = vmatpush.bf16.msra.mxu0 %v771
        %847 = vmatpush.bf16.msra.mxu0 %v770
        %848 = vmatmul.bf16.gmra.mxu0 %v563
        %v849 = vpop.f32.mrf.mxu0
        %v850 = vadd.f32 %v836, %v849
        %v851 = vpop.f32.mrf.mxu0
        %v852 = vadd.f32 %v838, %v851
        %853 = vdwg.mxu0
        %854 = vmatpush.bf16.msra.mxu0 %v785
        %855 = vmatpush.bf16.msra.mxu0 %v784
        %856 = vmatpush.bf16.msra.mxu0 %v783
        %857 = vmatpush.bf16.msra.mxu0 %v782
        %858 = vmatpush.bf16.msra.mxu0 %v781
        %859 = vmatpush.bf16.msra.mxu0 %v780
        %860 = vmatpush.bf16.msra.mxu0 %v779
        %861 = vmatpush.bf16.msra.mxu0 %v778
        %862 = vmatmul.bf16.gmra.mxu0 %v564
        %v863 = vpop.f32.mrf.mxu0
        %v864 = vadd.f32 %v850, %v863
        %v865 = vpop.f32.mrf.mxu0
        %v866 = vadd.f32 %v852, %v865
        %867 = vdwg.mxu0
        %868 = vmatpush.bf16.msra.mxu0 %v793
        %869 = vmatpush.bf16.msra.mxu0 %v792
        %870 = vmatpush.bf16.msra.mxu0 %v791
        %871 = vmatpush.bf16.msra.mxu0 %v790
        %872 = vmatpush.bf16.msra.mxu0 %v789
        %873 = vmatpush.bf16.msra.mxu0 %v788
        %874 = vmatpush.bf16.msra.mxu0 %v787
        %875 = vmatpush.bf16.msra.mxu0 %v786
        %876 = vmatmul.bf16.gmra.mxu0 %v565
        %v877 = vpop.f32.mrf.mxu0
        %v878 = vadd.f32 %v864, %v877
        %v879 = vpop.f32.mrf.mxu0
        %v880 = vadd.f32 %v866, %v879
        %881 = vdwg.mxu0
        %882 = vst [vmem:[%s297] sm:$0xff] %v878
        %883 = vst [vmem:[%s297 + $0x8] sm:$0xff] %v880
        %s884 = smul.u32 2, %s19
        %p885 = scmp.lt.s32.totalorder %s884, 3
        %s886 = scalar_select %p885, %s884, 3
        %s887 = smul.addr %s886, 8
        %s888 = scalar_lea.vmem %s7, %s887
        // Predicated region
        $region53: #{mlp_relu_ae_forward.1} parent=47 // pred_check
          %p889 = pneg %p189
        $region54: #{mlp_relu_ae_forward.1} parent=47 // pred_check_branch
          %891 = sbr.rel (%p889) target = $region56
        $region55: #{mlp_relu_ae_forward.1} parent=47 // pred_region
          %s892 = smul.u32 2, %s19
        $region56: #{mlp_relu_ae_forward.1} parent=47 // pred_fallthru
          _
      $region48: #{mlp_relu_ae_forward.1} parent=5 // pred_fallthru
        _
      %p893 = scmp.le.s32.totalorder 2, %s14
      // Predicated region
      $region57: #{mlp_relu_ae_forward.1} parent=5 // pred_check
        %p894 = pneg %p893
      $region58: #{mlp_relu_ae_forward.1} parent=5 // pred_check_branch
        %896 = sbr.rel (%p894) target = $region60
      $region59: #{mlp_relu_ae_forward.1} parent=5 // pred_region
        %s897 = ssub.s32 %s14, 2
        // Predicated region
        $region61: #{mlp_relu_ae_forward.1} parent=59 // pred_check
          %p898 = pneg %p195
        $region62: #{mlp_relu_ae_forward.1} parent=59 // pred_check_branch
          %900 = sbr.rel (%p898) target = $region64
        $region63: #{mlp_relu_ae_forward.1} parent=59 // pred_region
          %s901 = smul.u32 2, %s20
          %p902 = scmp.lt.s32.totalorder %s901, 3
          %s903 = scalar_select %p902, %s901, 3
          %s904 = smul.addr %s903, 8
          %s905 = scalar_lea.vmem %s7, %s904
        $region64: #{mlp_relu_ae_forward.1} parent=59 // pred_fallthru
          _
      $region60: #{mlp_relu_ae_forward.1} parent=5 // pred_fallthru
        _
    $region6: #{mlp_relu_ae_forward.1} parent=1 // loop_footer
      %s18 = sadd.s32 1, %s14
    $region7: #{mlp_relu_ae_forward.1} parent=1 // loop_footer_branch
      %13 = sbr.rel target = $region3
    $region8: #{mlp_relu_ae_forward.1} parent=1 // loop_exit
      _
    %906 = vsyncpa [#allocation3], 1
    %s907 = scalar_lea.sflag [#allocation3], 1
    %908 = vsyncpa %s907, 1

</llo_original>
